<compile_context>
chip_gen: v6e
topology: v6e:2x2x1
jax: 0.10.0
libtpu: 0.0.40
codegen_flags: <defaults>
</compile_context>

<pallas_src>
import functools
import math

import jax
import jax.numpy as jnp
import numpy as np
from jax import lax
from jax.experimental import pallas as pl
from jax.experimental.pallas import tpu as pltpu


def _round_up(x, m):
    return (x + m - 1) // m * m


def _dsc_kernel(x_ref, wdw_ref, wblk_ref, o_ref, xp_ref, *,
                nb, k, pad, c_in, c_out, h, w, h_out, w_out,
                rows_per_img, roffs, l_in, tile_w):
    """Fused depthwise(kxk, groups=C_in) + pointwise(1x1) conv, lane-fused layout.

    x_ref:    (NB, H, W*C_in)              lane-dense input block (NB images)
    wdw_ref:  (k*k, L_IN)                  depthwise taps tiled along fused lanes,
                                           zeroed beyond W_out*C_in
    wblk_ref: (tile_w*C_in, tile_w*C_out)  shared kron(I_tile_w, Wpw) pointwise block
    o_ref:    (NB, H_out, W_out*C_out)     lane-dense output block
    xp_ref:   (scr_rows, L_SCR) f32        zero-haloed input slab (scratch)
    """
    scr_rows, l_scr = xp_ref.shape
    rows_acc = nb * rows_per_img

    # ---- 1) Fill the scratch slab: lane-0 / 8-row aligned input stores (unmasked vst)
    #         and halo-only zeroing (not a full-slab memset).
    def _zero_rows(start, nrows):
        if nrows > 0:
            xp_ref[pl.ds(start, nrows), :] = jnp.zeros((nrows, l_scr), jnp.float32)

    _zero_rows(0, roffs)                                        # top zero-pad rows
    for b in range(nb):
        r0 = roffs + b * rows_per_img
        _zero_rows(r0 + h, rows_per_img - h)                    # bottom halo of image b
        xp_ref[pl.ds(r0, h), pl.ds(0, w * c_in)] = x_ref[b].astype(jnp.float32)
    _zero_rows(roffs + rows_acc, scr_rows - roffs - rows_acc)   # tail rows
    if l_scr > w * c_in:                                        # right pad + align tail
        xp_ref[pl.ds(roffs, rows_acc), pl.ds(w * c_in, l_scr - w * c_in)] = (
            jnp.zeros((rows_acc, l_scr - w * c_in), jnp.float32))

    # ---- 2) Depthwise conv: column shifts hoisted out of the row loop -> k full-slab
    #         XLU rolls total (was k*(k-1)); the first roll also supplies the left pad
    #         so the input store above can be lane-0 aligned.
    #         Correctness relies on slab lanes >= W*C_in being zero (they become the
    #         left/right pad after the wrap-around rolls) -- guarded in the wrapper.
    xp = xp_ref[...]
    wdw = wdw_ref[...]
    acc = jnp.zeros((rows_acc, l_in), jnp.float32)
    cur = pltpu.roll(xp, shift=pad * c_in, axis=1) if pad > 0 else xp
    for j in range(k):
        for i in range(k):
            r0 = roffs + i - pad                 # row tap i: static sublane band
            band = cur[r0:r0 + rows_acc, :l_in]
            acc = acc + band * wdw[i * k + j][None, :]
        if j + 1 < k:
            cur = pltpu.roll(cur, shift=l_scr - c_in, axis=1)   # next column tap (left)

    # ---- 3) Pointwise 1x1 conv: chunked lane-dense MXU matmuls against a SHARED
    #         kron(I_tile_w, Wpw) block.  Weight is O(tile_w^2*Cin*Cout) (bounded),
    #         MXU overhead factor is tile_w instead of W_out.
    n_chunks = w_out // tile_w
    twci, twco = tile_w * c_in, tile_w * c_out
    wblk = wblk_ref[...]
    ys = [jnp.dot(acc[:, c * twci:(c + 1) * twci], wblk,
                  preferred_element_type=jnp.float32)
          for c in range(n_chunks)]
    y = ys[0] if n_chunks == 1 else jnp.concatenate(ys, axis=1)

    # ---- 4) Lane-dense stores (minor dim = W_out*C_out, a multiple of 128 in the demo).
    for b in range(nb):
        r0 = b * rows_per_img
        o_ref[b] = y[r0:r0 + h_out].astype(o_ref.dtype)


def depthwise_separable_conv_nhwc(x_nhwc, w_dw, w_pw, *, padding=1,
                                  images_per_block=None):
    """Channels-last fast path. x_nhwc: (N,H,W,C_in); w_dw: (C_in,1,k,k); w_pw: (C_out,C_in,1,1)."""
    n, h, w, c_in = x_nhwc.shape
    c_out = w_pw.shape[0]
    assert w_pw.shape[1] == c_in
    k = w_dw.shape[-1]
    pad = padding
    hp, wp = h + 2 * pad, w + 2 * pad
    h_out, w_out = hp - k + 1, wp - k + 1
    assert h_out > 0 and w_out > 0

    # Row geometry: per-image row block (8-aligned), top zero rows (8-aligned so the
    # input stores start on sublane-tile boundaries), and a small tail for the last band.
    rows_per_img = _round_up(hp, 8)
    roffs = _round_up(pad, 8)
    tail = _round_up(max(k - 1 - pad, 0), 8)

    # Images per grid step: target matmul-M rows ~256 while keeping several grid steps
    # so BlockSpec double-buffering has work and v7x can shard across its 2 TCs.
    if images_per_block is None:
        nb = max(1, min(n, 256 // max(rows_per_img, 1)))
        min_steps = min(n, 4)
        while nb > 1 and n // nb < min_steps:
            nb -= 1
        while n % nb:
            nb -= 1
        images_per_block = nb
    nb = images_per_block
    assert n % nb == 0
    num_blocks = n // nb
    rows_acc = nb * rows_per_img

    scr_rows = roffs + rows_acc + tail
    l_scr = _round_up(wp * c_in, 128)          # scratch slab lane width
    l_in = _round_up(w_out * c_in, 128)        # depthwise accumulator lane width

    # Pointwise chunking along W_out: smallest tile with tile_w*C_in a multiple of 128
    # (lane-aligned K slices, full MXU K fill).  Degrades to tile_w=1 (dense Cin x Cout
    # matmul) when C_in >= 128.
    tw_min = 128 // math.gcd(c_in, 128)
    if tw_min <= w_out and w_out % tw_min == 0:
        tile_w = tw_min
    else:
        tile_w = w_out     # fallback: single chunk (fine for small W_out*C_in)
    # TODO(synk): handle w_out % tw_min != 0 with a padded remainder chunk.

    # Static guards for the zero-pad / roll-wrap-around coupling (fragile by design).
    assert l_scr >= (w + pad) * c_in, "wrapped lanes used as pad must exist and be zero"
    assert roffs >= pad and rows_per_img >= h + pad and rows_per_img >= h_out
    assert scr_rows >= roffs + rows_acc + max(k - 1 - pad, 0)
    assert w_out % tile_w == 0

    # Lane-dense fused input view (metadata-only reshape, no copy).
    x_fused = x_nhwc.reshape(n, h, w * c_in)

    # Depthwise taps tiled along the fused W*C lane axis; lanes >= W_out*C_in are zeroed
    # so roll wrap-around garbage never reaches the accumulator.
    wdw_taps = jnp.transpose(w_dw[:, 0], (1, 2, 0)).reshape(k * k, c_in)
    reps = -(-l_in // c_in)
    wdw_lanes = jnp.tile(wdw_taps, (1, reps))[:, :l_in]
    lane_ok = jnp.arange(l_in) < w_out * c_in
    wdw_lanes = jnp.where(lane_ok[None, :], wdw_lanes, 0.0).astype(jnp.float32)

    # Shared pointwise weight block: kron(I_tile_w, Wpw), reused for every W_out chunk.
    wpw = jnp.transpose(w_pw[:, :, 0, 0], (1, 0)).astype(jnp.float32)   # (C_in, C_out)
    wblk = jnp.kron(jnp.eye(tile_w, dtype=jnp.float32), wpw)

    kern = functools.partial(
        _dsc_kernel, nb=nb, k=k, pad=pad, c_in=c_in, c_out=c_out,
        h=h, w=w, h_out=h_out, w_out=w_out,
        rows_per_img=rows_per_img, roffs=roffs, l_in=l_in, tile_w=tile_w)

    # Explicit VMEM budget (double-buffered blocks + weights + scratch + live values)
    # so double-buffering survives on 64 MiB-VMEM parts (v7x).
    isz = x_nhwc.dtype.itemsize
    per_step = (2 * (nb * h * w * c_in * isz)
                + 2 * (nb * h_out * w_out * c_out * isz)
                + 2 * (k * k * l_in * 4)
                + 2 * (tile_w * c_in * tile_w * c_out * 4)
                + scr_rows * l_scr * 4
                + (rows_acc * l_in + scr_rows * l_scr + rows_acc * w_out * c_out) * 4)
    vmem_limit = int(min(max(int(1.5 * per_step) + (4 << 20), 32 << 20), 100 << 20))

    out_fused = pl.pallas_call(
        kern,
        out_shape=jax.ShapeDtypeStruct((n, h_out, w_out * c_out), x_nhwc.dtype),
        grid_spec=pltpu.PrefetchScalarGridSpec(
            num_scalar_prefetch=0,
            grid=(num_blocks,),
            in_specs=[
                pl.BlockSpec((nb, h, w * c_in), lambda g: (g, 0, 0)),
                pl.BlockSpec((k * k, l_in), lambda g: (0, 0)),
                pl.BlockSpec((tile_w * c_in, tile_w * c_out), lambda g: (0, 0)),
            ],
            out_specs=pl.BlockSpec((nb, h_out, w_out * c_out),
                                   lambda g: (g, 0, 0)),
            scratch_shapes=[pltpu.VMEM((scr_rows, l_scr), jnp.float32)],
        ),
        compiler_params=pltpu.CompilerParams(
            dimension_semantics=("parallel",),
            vmem_limit_bytes=vmem_limit),
    )(x_fused, wdw_lanes, wblk)

    # Free metadata reshape back to (N, H_out, W_out, C_out).
    return out_fused.reshape(n, h_out, w_out, c_out)


def depthwise_separable_conv(x_nchw, w_dw, w_pw, *, padding=1,
                             images_per_block=None):
    """PyTorch-layout wrapper: x (N, C_in, H, W) -> (N, C_out, H_out, W_out)."""
    # The two transposes are forced by the NCHW interface; channels-last callers should
    # call depthwise_separable_conv_nhwc directly and skip both HBM passes.
    x_nhwc = jnp.transpose(x_nchw, (0, 2, 3, 1))
    out_nhwc = depthwise_separable_conv_nhwc(
        x_nhwc, w_dw, w_pw, padding=padding, images_per_block=images_per_block)
    return jnp.transpose(out_nhwc, (0, 3, 1, 2))


def _reference(x_nchw, w_dw, w_pw, *, padding=1):
    """Pure-JAX reference matching nn.Conv2d semantics (no bias)."""
    dw = lax.conv_general_dilated(
        x_nchw, w_dw, window_strides=(1, 1),
        padding=[(padding, padding), (padding, padding)],
        dimension_numbers=("NCHW", "OIHW", "NCHW"),
        feature_group_count=x_nchw.shape[1])
    pw = lax.conv_general_dilated(
        dw, w_pw, window_strides=(1, 1), padding="VALID",
        dimension_numbers=("NCHW", "OIHW", "NCHW"))
    return pw


if __name__ == "__main__":
    # Small shapes consistent with the module.  C_in=8 makes the fused input lane axis
    # W*C_in = 128 (exactly one lane width); C_out=16 exercises C_in != C_out.
    N, C_IN, C_OUT, H, W, K = 2, 8, 16, 16, 16, 3

    key = jax.random.PRNGKey(0)
    k_x, k_dw, k_pw = jax.random.split(key, 3)
    x = jax.random.normal(k_x, (N, C_IN, H, W), dtype=jnp.float32)
    w_dw = 0.2 * jax.random.normal(k_dw, (C_IN, 1, K, K), dtype=jnp.float32)
    w_pw = 0.2 * jax.random.normal(k_pw, (C_OUT, C_IN, 1, 1), dtype=jnp.float32)

    out = depthwise_separable_conv(x, w_dw, w_pw, padding=1)
    out = jax.block_until_ready(out)

    ref = _reference(x, w_dw, w_pw, padding=1)
    ref = jax.block_until_ready(ref)

    assert out.shape == (N, C_OUT, H, W), out.shape
    np.testing.assert_allclose(np.asarray(out), np.asarray(ref),
                               rtol=1e-4, atol=1e-4)
    print("KERNEL_OK")
</pallas_src>

<mosaic_0001>
module attributes {stable_mosaic.version = 11 : i64} {
  func.func @_dsc_kernel(%arg0: i32, %arg1: memref<1x16x128xf32, #tpu.memory_space<vmem>>, %arg2: memref<9x128xf32, #tpu.memory_space<vmem>>, %arg3: memref<128x256xf32, #tpu.memory_space<vmem>>, %arg4: memref<1x16x256xf32, #tpu.memory_space<vmem>>, %arg5: memref<40x256xf32, #tpu.memory_space<vmem>>) attributes {dimension_semantics = [#tpu.dimension_semantics<parallel>], iteration_bounds = array<i64: 2>, scalar_prefetch = 0 : i64, scratch_operands = 1 : i64, tpu.core_type = #tpu.core_type<tc>, window_params = [{transform_indices = @transform_0, window_bounds = array<i64: 1, 16, 128>}, {pipeline_mode = #tpu.pipeline_mode<synchronous>, transform_indices = @transform_1, window_bounds = array<i64: 9, 128>}, {pipeline_mode = #tpu.pipeline_mode<synchronous>, transform_indices = @transform_2, window_bounds = array<i64: 128, 256>}, {transform_indices = @transform_3, window_bounds = array<i64: 1, 16, 256>}]} {
    %cst = arith.constant 0.000000e+00 : f32
    %0 = vector.broadcast %cst : f32 to vector<8x256xf32>
    %c0 = arith.constant 0 : index
    %c0_0 = arith.constant 0 : index
    %1 = vector.load %arg5[%c0, %c0_0] : memref<40x256xf32, #tpu.memory_space<vmem>>, vector<8x256xf32>
    tpu.vector_store %arg5[%c0, %c0_0], %0 {strides = array<i32>} : memref<40x256xf32, #tpu.memory_space<vmem>>, vector<8x256xf32>,
    %cst_1 = arith.constant 0.000000e+00 : f32
    %2 = vector.broadcast %cst_1 : f32 to vector<8x256xf32>
    %c24 = arith.constant 24 : index
    %c0_2 = arith.constant 0 : index
    %3 = vector.load %arg5[%c24, %c0_2] : memref<40x256xf32, #tpu.memory_space<vmem>>, vector<8x256xf32>
    tpu.vector_store %arg5[%c24, %c0_2], %2 {strides = array<i32>} : memref<40x256xf32, #tpu.memory_space<vmem>>, vector<8x256xf32>,
    %c0_3 = arith.constant 0 : index
    %c0_4 = arith.constant 0 : index
    %c0_5 = arith.constant 0 : index
    %4 = vector.load %arg1[%c0_3, %c0_4, %c0_5] : memref<1x16x128xf32, #tpu.memory_space<vmem>>, vector<1x16x128xf32>
    %5 = vector.shape_cast %4 : vector<1x16x128xf32> to vector<16x128xf32>
    %c8 = arith.constant 8 : index
    %c0_6 = arith.constant 0 : index
    %6 = vector.load %arg5[%c8, %c0_6] : memref<40x256xf32, #tpu.memory_space<vmem>>, vector<16x128xf32>
    tpu.vector_store %arg5[%c8, %c0_6], %5 {strides = array<i32>} : memref<40x256xf32, #tpu.memory_space<vmem>>, vector<16x128xf32>,
    %cst_7 = arith.constant 0.000000e+00 : f32
    %7 = vector.broadcast %cst_7 : f32 to vector<8x256xf32>
    %c32 = arith.constant 32 : index
    %c0_8 = arith.constant 0 : index
    %8 = vector.load %arg5[%c32, %c0_8] : memref<40x256xf32, #tpu.memory_space<vmem>>, vector<8x256xf32>
    tpu.vector_store %arg5[%c32, %c0_8], %7 {strides = array<i32>} : memref<40x256xf32, #tpu.memory_space<vmem>>, vector<8x256xf32>,
    %cst_9 = arith.constant 0.000000e+00 : f32
    %9 = vector.broadcast %cst_9 : f32 to vector<24x128xf32>
    %c8_10 = arith.constant 8 : index
    %c128 = arith.constant 128 : index
    %10 = vector.load %arg5[%c8_10, %c128] : memref<40x256xf32, #tpu.memory_space<vmem>>, vector<24x128xf32>
    tpu.vector_store %arg5[%c8_10, %c128], %9 {strides = array<i32>} : memref<40x256xf32, #tpu.memory_space<vmem>>, vector<24x128xf32>,
    %c0_11 = arith.constant 0 : index
    %c0_12 = arith.constant 0 : index
    %11 = vector.load %arg5[%c0_11, %c0_12] : memref<40x256xf32, #tpu.memory_space<vmem>>, vector<40x256xf32>
    %c0_13 = arith.constant 0 : index
    %c0_14 = arith.constant 0 : index
    %12 = vector.load %arg2[%c0_13, %c0_14] : memref<9x128xf32, #tpu.memory_space<vmem>>, vector<9x128xf32>
    %cst_15 = arith.constant 0.000000e+00 : f32
    %13 = vector.broadcast %cst_15 : f32 to vector<24x128xf32>
    %c8_i32 = arith.constant 8 : i32
    %14 = tpu.dynamic_rotate %11 by %c8_i32 dim 1 : vector<40x256xf32>, i32 -> vector<40x256xf32>
    %15 = vector.extract_strided_slice %14 {offsets = [7, 0], sizes = [24, 128], strides = [1, 1]} : vector<40x256xf32> to vector<24x128xf32>
    %16 = vector.extract_strided_slice %12 {offsets = [0, 0], sizes = [1, 128], strides = [1, 1]} : vector<9x128xf32> to vector<1x128xf32>
    %17 = vector.shape_cast %16 : vector<1x128xf32> to vector<128xf32>
    %18 = vector.shape_cast %17 : vector<128xf32> to vector<1x128xf32>
    %19 = vector.broadcast %18 : vector<1x128xf32> to vector<24x128xf32>
    %20 = arith.mulf %15, %19 : vector<24x128xf32>
    %21 = arith.addf %13, %20 : vector<24x128xf32>
    %22 = vector.extract_strided_slice %14 {offsets = [8, 0], sizes = [24, 128], strides = [1, 1]} : vector<40x256xf32> to vector<24x128xf32>
    %23 = vector.extract_strided_slice %12 {offsets = [3, 0], sizes = [1, 128], strides = [1, 1]} : vector<9x128xf32> to vector<1x128xf32>
    %24 = vector.shape_cast %23 : vector<1x128xf32> to vector<128xf32>
    %25 = vector.shape_cast %24 : vector<128xf32> to vector<1x128xf32>
    %26 = vector.broadcast %25 : vector<1x128xf32> to vector<24x128xf32>
    %27 = arith.mulf %22, %26 : vector<24x128xf32>
    %28 = arith.addf %21, %27 : vector<24x128xf32>
    %29 = vector.extract_strided_slice %14 {offsets = [9, 0], sizes = [24, 128], strides = [1, 1]} : vector<40x256xf32> to vector<24x128xf32>
    %30 = vector.extract_strided_slice %12 {offsets = [6, 0], sizes = [1, 128], strides = [1, 1]} : vector<9x128xf32> to vector<1x128xf32>
    %31 = vector.shape_cast %30 : vector<1x128xf32> to vector<128xf32>
    %32 = vector.shape_cast %31 : vector<128xf32> to vector<1x128xf32>
    %33 = vector.broadcast %32 : vector<1x128xf32> to vector<24x128xf32>
    %34 = arith.mulf %29, %33 : vector<24x128xf32>
    %35 = arith.addf %28, %34 : vector<24x128xf32>
    %c248_i32 = arith.constant 248 : i32
    %36 = tpu.dynamic_rotate %14 by %c248_i32 dim 1 : vector<40x256xf32>, i32 -> vector<40x256xf32>
    %37 = vector.extract_strided_slice %36 {offsets = [7, 0], sizes = [24, 128], strides = [1, 1]} : vector<40x256xf32> to vector<24x128xf32>
    %38 = vector.extract_strided_slice %12 {offsets = [1, 0], sizes = [1, 128], strides = [1, 1]} : vector<9x128xf32> to vector<1x128xf32>
    %39 = vector.shape_cast %38 : vector<1x128xf32> to vector<128xf32>
    %40 = vector.shape_cast %39 : vector<128xf32> to vector<1x128xf32>
    %41 = vector.broadcast %40 : vector<1x128xf32> to vector<24x128xf32>
    %42 = arith.mulf %37, %41 : vector<24x128xf32>
    %43 = arith.addf %35, %42 : vector<24x128xf32>
    %44 = vector.extract_strided_slice %36 {offsets = [8, 0], sizes = [24, 128], strides = [1, 1]} : vector<40x256xf32> to vector<24x128xf32>
    %45 = vector.extract_strided_slice %12 {offsets = [4, 0], sizes = [1, 128], strides = [1, 1]} : vector<9x128xf32> to vector<1x128xf32>
    %46 = vector.shape_cast %45 : vector<1x128xf32> to vector<128xf32>
    %47 = vector.shape_cast %46 : vector<128xf32> to vector<1x128xf32>
    %48 = vector.broadcast %47 : vector<1x128xf32> to vector<24x128xf32>
    %49 = arith.mulf %44, %48 : vector<24x128xf32>
    %50 = arith.addf %43, %49 : vector<24x128xf32>
    %51 = vector.extract_strided_slice %36 {offsets = [9, 0], sizes = [24, 128], strides = [1, 1]} : vector<40x256xf32> to vector<24x128xf32>
    %52 = vector.extract_strided_slice %12 {offsets = [7, 0], sizes = [1, 128], strides = [1, 1]} : vector<9x128xf32> to vector<1x128xf32>
    %53 = vector.shape_cast %52 : vector<1x128xf32> to vector<128xf32>
    %54 = vector.shape_cast %53 : vector<128xf32> to vector<1x128xf32>
    %55 = vector.broadcast %54 : vector<1x128xf32> to vector<24x128xf32>
    %56 = arith.mulf %51, %55 : vector<24x128xf32>
    %57 = arith.addf %50, %56 : vector<24x128xf32>
    %c248_i32_16 = arith.constant 248 : i32
    %58 = tpu.dynamic_rotate %36 by %c248_i32_16 dim 1 : vector<40x256xf32>, i32 -> vector<40x256xf32>
    %59 = vector.extract_strided_slice %58 {offsets = [7, 0], sizes = [24, 128], strides = [1, 1]} : vector<40x256xf32> to vector<24x128xf32>
    %60 = vector.extract_strided_slice %12 {offsets = [2, 0], sizes = [1, 128], strides = [1, 1]} : vector<9x128xf32> to vector<1x128xf32>
    %61 = vector.shape_cast %60 : vector<1x128xf32> to vector<128xf32>
    %62 = vector.shape_cast %61 : vector<128xf32> to vector<1x128xf32>
    %63 = vector.broadcast %62 : vector<1x128xf32> to vector<24x128xf32>
    %64 = arith.mulf %59, %63 : vector<24x128xf32>
    %65 = arith.addf %57, %64 : vector<24x128xf32>
    %66 = vector.extract_strided_slice %58 {offsets = [8, 0], sizes = [24, 128], strides = [1, 1]} : vector<40x256xf32> to vector<24x128xf32>
    %67 = vector.extract_strided_slice %12 {offsets = [5, 0], sizes = [1, 128], strides = [1, 1]} : vector<9x128xf32> to vector<1x128xf32>
    %68 = vector.shape_cast %67 : vector<1x128xf32> to vector<128xf32>
    %69 = vector.shape_cast %68 : vector<128xf32> to vector<1x128xf32>
    %70 = vector.broadcast %69 : vector<1x128xf32> to vector<24x128xf32>
    %71 = arith.mulf %66, %70 : vector<24x128xf32>
    %72 = arith.addf %65, %71 : vector<24x128xf32>
    %73 = vector.extract_strided_slice %58 {offsets = [9, 0], sizes = [24, 128], strides = [1, 1]} : vector<40x256xf32> to vector<24x128xf32>
    %74 = vector.extract_strided_slice %12 {offsets = [8, 0], sizes = [1, 128], strides = [1, 1]} : vector<9x128xf32> to vector<1x128xf32>
    %75 = vector.shape_cast %74 : vector<1x128xf32> to vector<128xf32>
    %76 = vector.shape_cast %75 : vector<128xf32> to vector<1x128xf32>
    %77 = vector.broadcast %76 : vector<1x128xf32> to vector<24x128xf32>
    %78 = arith.mulf %73, %77 : vector<24x128xf32>
    %79 = arith.addf %72, %78 : vector<24x128xf32>
    %c0_17 = arith.constant 0 : index
    %c0_18 = arith.constant 0 : index
    %80 = vector.load %arg3[%c0_17, %c0_18] : memref<128x256xf32, #tpu.memory_space<vmem>>, vector<128x256xf32>
    %cst_19 = arith.constant dense<0.000000e+00> : vector<24x256xf32>
    %81 = tpu.matmul %79, %80, %cst_19 {dimension_numbers = #tpu.dot_dimension_numbers<[1], [0], [0], [1], [0, 0, 1, 1], [], []>} : vector<24x128xf32>, vector<128x256xf32>, vector<24x256xf32> -> vector<24x256xf32>
    %82 = vector.extract_strided_slice %81 {offsets = [0, 0], sizes = [16, 256], strides = [1, 1]} : vector<24x256xf32> to vector<16x256xf32>
    %c0_20 = arith.constant 0 : index
    %c0_21 = arith.constant 0 : index
    %c0_22 = arith.constant 0 : index
    %83 = vector.load %arg4[%c0_20, %c0_21, %c0_22] : memref<1x16x256xf32, #tpu.memory_space<vmem>>, vector<1x16x256xf32>
    %84 = vector.shape_cast %83 : vector<1x16x256xf32> to vector<16x256xf32>
    %85 = vector.shape_cast %82 : vector<16x256xf32> to vector<1x16x256xf32>
    tpu.vector_store %arg4[%c0_20, %c0_21, %c0_22], %85 {strides = array<i32>} : memref<1x16x256xf32, #tpu.memory_space<vmem>>, vector<1x16x256xf32>,
    return
  }
  func.func @transform_0(%arg0: i32) -> (i32, i32, i32) {
    %c0_i32 = arith.constant 0 : i32
    %c0_i32_0 = arith.constant 0 : i32
    %c0_i32_1 = arith.constant 0 : i32
    return %arg0, %c0_i32, %c0_i32_0 : i32, i32, i32
  }
  func.func @transform_1(%arg0: i32) -> (i32, i32) {
    %c0_i32 = arith.constant 0 : i32
    %c0_i32_0 = arith.constant 0 : i32
    %c0_i32_1 = arith.constant 0 : i32
    return %c0_i32, %c0_i32_0 : i32, i32
  }
  func.func @transform_2(%arg0: i32) -> (i32, i32) {
    %c0_i32 = arith.constant 0 : i32
    %c0_i32_0 = arith.constant 0 : i32
    %c0_i32_1 = arith.constant 0 : i32
    return %c0_i32, %c0_i32_0 : i32, i32
  }
  func.func @transform_3(%arg0: i32) -> (i32, i32, i32) {
    %c0_i32 = arith.constant 0 : i32
    %c0_i32_0 = arith.constant 0 : i32
    %c0_i32_1 = arith.constant 0 : i32
    return %arg0, %c0_i32, %c0_i32_0 : i32, i32, i32
  }
}

</mosaic_0001>

<llo_original>
// kernel: tpu_custom_call.1
$region0: #{tpu_custom_call.1}
  #allocation0 [shape = 'u32[]', space=smem, size = 0x4, offset = 0x4, fixed_abs, tag = 'smem constant byte address 0x4 - core index']
  #allocation1 [shape = 'u32[144,128]{1,0:T(1,128)}', space=vmem, size = 0x12000, scoped, tag = 'internal scratch']
  #allocation2 [shape = 'f32[40,256]{1,0:T(8,128)}', space=vmem, size = 0xa000, scoped, tag = 'scratch operand']
  %s0 = inlined_call_operand.hbm [shape: f32[2,16,128], index: 0, kind: input, shape index: {}]
  %s1 = inlined_call_operand.hbm [shape: f32[9,128], index: 1, kind: input, shape index: {}]
  %s2 = inlined_call_operand.hbm [shape: f32[128,256], index: 2, kind: input, shape index: {}]
  %s3 = inlined_call_operand.hbm [shape: f32[2,16,256], index: 3, kind: output, shape index: {}]
  %s4 = sld [smem:[#allocation0]]
  $region57: #{tpu_custom_call.1} parent=0
    _
  %s6 = ssub.s32 1, %s4
  %s7 = scalar_select 0, %s6, %s4
  $region1: #{tpu_custom_call.1} parent=0
    #allocation3 [shape = 'u8[16384]{0}', space=vmem, size = 0x4000, scoped, tag = 'input window, operand 0']
    #allocation4 [shape = 's32[2]{0}', space=sflag, size = 0x8, scoped, tag = 'scoped memory for tpu_custom_call.1']
    #allocation5 [shape = 's32[2]{0}', space=sflag, size = 0x8, scoped, tag = 'scoped memory for tpu_custom_call.1']
    #allocation6 [shape = 'u8[8192]{0}', space=vmem, size = 0x2000, scoped, tag = 'input window, operand 1, single buffered']
    #allocation7 [shape = 's32[1]{0}', space=sflag, size = 0x4, scoped, tag = 'scoped memory for tpu_custom_call.1']
    #allocation8 [shape = 'u8[131072]{0}', space=vmem, size = 0x20000, scoped, tag = 'input window, operand 2, single buffered']
    #allocation9 [shape = 'u8[32768]{0}', space=vmem, size = 0x8000, scoped, tag = 'output window, operand 0']
    %8 = vsyncpa [#allocation4], 0
    %s9 = scalar_lea.sflag [#allocation4], 1
    %10 = vsyncpa %s9, 0
    %11 = vsyncpa [#allocation7], 0
    %12 = vsyncpa [#allocation5], 0
    %s13 = scalar_lea.sflag [#allocation5], 1
    %14 = vsyncpa %s13, 0
    loop: start=0, step=1, limit=4
    $region2: #{tpu_custom_call.1} parent=1 // loop_pre_header
      _
    $region3: #{tpu_custom_call.1} parent=1 // loop_header
      %s16 = sphi 0, %s20
      %p17 = scmp.ge.s32.totalorder %s16, 4
      %s26 = sphi 0, %s28
      %s29 = sphi 0, %s26
      %s30 = sphi 0, %s29
      %s46 = sphi 0, %s30
      %s50 = sphi 0, %s50
      %s52 = sphi 0, %s50
      %s53 = sphi 0, %s52
      %s67 = sphi 0, %s53
      %s71 = sphi 0, %s71
      %s73 = sphi 0, %s71
      %s74 = sphi 0, %s73
      %s88 = sphi 0, %s74
      %s94 = sphi 0, %s96
      %s97 = sphi 0, %s94
      %s98 = sphi 0, %s97
      %s114 = sphi 0, %s98
    $region4: #{tpu_custom_call.1} parent=1 // loop_header_branch
      %19 = sbr.rel (%p17) target = $region8
    $region5: #{tpu_custom_call.1} parent=1 // loop_body
      %s21 = ssub.s32 %s16, 1
      %s22 = ssub.s32 %s16, 2
      %s23 = sadd.s32 %s16, 1
      %s24 = ssub.s32 %s16, %s23
      %p25 = scmp.eq.s32.totalorder %s24, 0
      %s27 = sadd.s32 %s26, 1
      %s28 = scalar_select %p25, %s26, %s27
      %p31 = pneg %p25
      %p32 = scmp.eq.s32.totalorder %s16, 1
      %p33 = por %p31, %p32
      %p34 = scmp.ne.s32.totalorder %s26, %s29
      %p35 = scmp.eq.s32.totalorder %s16, 0
      %p36 = por %p34, %p35
      %p37 = scmp.ne.s32.totalorder %s26, %s29
      %p38 = scmp.eq.s32.totalorder %s21, 1
      %p39 = por %p37, %p38
      %p40 = scmp.ne.s32.totalorder %s29, %s30
      %p41 = scmp.eq.s32.totalorder %s21, 0
      %p42 = por %p40, %p41
      %p43 = scmp.ne.s32.totalorder %s29, %s30
      %p44 = scmp.eq.s32.totalorder %s22, 1
      %p45 = por %p43, %p44
      %p47 = scmp.ne.s32.totalorder %s30, %s46
      %p48 = scmp.eq.s32.totalorder %s22, 0
      %p49 = por %p47, %p48
      %s51 = sadd.s32 %s50, 1
      %p54 = scmp.eq.s32.totalorder %s16, 1
      %p55 = scmp.ne.s32.totalorder %s50, %s52
      %p56 = scmp.eq.s32.totalorder %s16, 0
      %p57 = por %p55, %p56
      %p58 = scmp.ne.s32.totalorder %s50, %s52
      %p59 = scmp.eq.s32.totalorder %s21, 1
      %p60 = por %p58, %p59
      %p61 = scmp.ne.s32.totalorder %s52, %s53
      %p62 = scmp.eq.s32.totalorder %s21, 0
      %p63 = por %p61, %p62
      %p64 = scmp.ne.s32.totalorder %s52, %s53
      %p65 = scmp.eq.s32.totalorder %s22, 1
      %p66 = por %p64, %p65
      %p68 = scmp.ne.s32.totalorder %s53, %s67
      %p69 = scmp.eq.s32.totalorder %s22, 0
      %p70 = por %p68, %p69
      %s72 = sadd.s32 %s71, 1
      %p75 = scmp.eq.s32.totalorder %s16, 1
      %p76 = scmp.ne.s32.totalorder %s71, %s73
      %p77 = scmp.eq.s32.totalorder %s16, 0
      %p78 = por %p76, %p77
      %p79 = scmp.ne.s32.totalorder %s71, %s73
      %p80 = scmp.eq.s32.totalorder %s21, 1
      %p81 = por %p79, %p80
      %p82 = scmp.ne.s32.totalorder %s73, %s74
      %p83 = scmp.eq.s32.totalorder %s21, 0
      %p84 = por %p82, %p83
      %p85 = scmp.ne.s32.totalorder %s73, %s74
      %p86 = scmp.eq.s32.totalorder %s22, 1
      %p87 = por %p85, %p86
      %p89 = scmp.ne.s32.totalorder %s74, %s88
      %p90 = scmp.eq.s32.totalorder %s22, 0
      %p91 = por %p89, %p90
      %s92 = ssub.s32 %s16, %s23
      %p93 = scmp.eq.s32.totalorder %s92, 0
      %s95 = sadd.s32 %s94, 1
      %s96 = scalar_select %p93, %s94, %s95
      %p99 = pneg %p93
      %p100 = scmp.eq.s32.totalorder %s16, 1
      %p101 = por %p99, %p100
      %p102 = scmp.ne.s32.totalorder %s94, %s97
      %p103 = scmp.eq.s32.totalorder %s16, 0
      %p104 = por %p102, %p103
      %p105 = scmp.ne.s32.totalorder %s94, %s97
      %p106 = scmp.eq.s32.totalorder %s21, 1
      %p107 = por %p105, %p106
      %p108 = scmp.ne.s32.totalorder %s97, %s98
      %p109 = scmp.eq.s32.totalorder %s21, 0
      %p110 = por %p108, %p109
      %p111 = scmp.ne.s32.totalorder %s97, %s98
      %p112 = scmp.eq.s32.totalorder %s22, 1
      %p113 = por %p111, %p112
      %p115 = scmp.ne.s32.totalorder %s98, %s114
      %p116 = scmp.eq.s32.totalorder %s22, 0
      %p117 = por %p115, %p116
      %p118 = scmp.le.s32.totalorder 1, %s16
      %p119 = scmp.lt.s32.totalorder %s16, 3
      %p120 = pnand %p118, %p119
      %p121 = pneg %p120
      // Predicated region
      $region9: #{tpu_custom_call.1} parent=5 // pred_check
        _
      $region10: #{tpu_custom_call.1} parent=5 // pred_check_branch
        %123 = sbr.rel (%p120) target = $region12
      $region11: #{tpu_custom_call.1} parent=5 // pred_region
        %s124 = ssub.s32 %s16, 1
        // Predicated region
        $region13: #{tpu_custom_call.1} parent=11 // pred_check
          %p125 = pneg %p63
        $region14: #{tpu_custom_call.1} parent=11 // pred_check_branch
          %127 = sbr.rel (%p125) target = $region16
        $region15: #{tpu_custom_call.1} parent=11 // pred_region
          %s129 = ssub.s32 256, 256
          %130 = vsyncadd [#allocation7], %s129
          %s131 = sshll.u32 [#allocation6], 4
          %s132 = int_to_ptr.vmem [resolvable:$true] %s131
          %137 = dma.hbm_to_vmem [thread:$0]  %s1, 256, %s132, [#allocation7], 128, 128, 8
        $region16: #{tpu_custom_call.1} parent=11 // pred_fallthru
          _
        // Predicated region
        $region17: #{tpu_custom_call.1} parent=11 // pred_check
          %p138 = pneg %p84
        $region18: #{tpu_custom_call.1} parent=11 // pred_check_branch
          %140 = sbr.rel (%p138) target = $region20
        $region19: #{tpu_custom_call.1} parent=11 // pred_region
          %s142 = ssub.s32 4096, 4096
          %143 = vsyncadd [#allocation7], %s142
          %s144 = sshll.u32 [#allocation8], 4
          %s145 = int_to_ptr.vmem [resolvable:$true] %s144
          %150 = dma.hbm_to_vmem [thread:$0]  %s2, 4096, %s145, [#allocation7], 256, 256, 16
        $region20: #{tpu_custom_call.1} parent=11 // pred_fallthru
          _
      $region12: #{tpu_custom_call.1} parent=5 // pred_fallthru
        _
      %p151 = scmp.lt.s32.totalorder %s16, 2
      // Predicated region
      $region21: #{tpu_custom_call.1} parent=5 // pred_check
        %p152 = pneg %p151
      $region22: #{tpu_custom_call.1} parent=5 // pred_check_branch
        %154 = sbr.rel (%p152) target = $region24
      $region23: #{tpu_custom_call.1} parent=5 // pred_region
        // Predicated region
        $region25: #{tpu_custom_call.1} parent=23 // pred_check
          %p155 = pneg %p36
        $region26: #{tpu_custom_call.1} parent=23 // pred_check_branch
          %157 = sbr.rel (%p155) target = $region28
        $region27: #{tpu_custom_call.1} parent=23 // pred_region
          %s158 = sand.u32 %s26, 1
          %s159 = scalar_lea.sflag [#allocation4], %s158
          %s160 = sand.u32 %s26, 1
          %s161 = smul.addr %s160, 16
          %s162 = scalar_lea.vmem [#allocation3], %s161
          %s164 = ssub.s32 256, 256
          %165 = vsyncadd %s159, %s164
          %s166 = smul.addr %s16, 2
          %s167 = smul.addr %s166, 128
          %s168 = scalar_lea.hbm %s0, %s167
          %s169 = sshll.u32 %s162, 4
          %s170 = int_to_ptr.vmem [resolvable:$true] %s169
          %175 = dma.hbm_to_vmem [thread:$0]  %s168, 256, %s170, %s159, 128, 128, 8
        $region28: #{tpu_custom_call.1} parent=23 // pred_fallthru
          _
      $region24: #{tpu_custom_call.1} parent=5 // pred_fallthru
        _
      %p176 = scmp.le.s32.totalorder 1, %s16
      %p177 = scmp.lt.s32.totalorder %s16, 3
      %p178 = pnand %p176, %p177
      %p179 = pneg %p178
      // Predicated region
      $region29: #{tpu_custom_call.1} parent=5 // pred_check
        _
      $region30: #{tpu_custom_call.1} parent=5 // pred_check_branch
        %181 = sbr.rel (%p178) target = $region32
      $region31: #{tpu_custom_call.1} parent=5 // pred_region
        %s182 = ssub.s32 %s16, 1
        %s183 = sand.u32 %s29, 1
        %s184 = scalar_lea.sflag [#allocation4], %s183
        %s185 = sand.u32 %s29, 1
        %s186 = smul.addr %s185, 16
        %s187 = scalar_lea.vmem [#allocation3], %s186
        // Predicated region
        $region33: #{tpu_custom_call.1} parent=31 // pred_check
          %p188 = pneg %p42
        $region34: #{tpu_custom_call.1} parent=31 // pred_check_branch
          %190 = sbr.rel (%p188) target = $region36
        $region35: #{tpu_custom_call.1} parent=31 // pred_region
          %191 = dma.done %s184, 256
        $region36: #{tpu_custom_call.1} parent=31 // pred_fallthru
          _
        // Predicated region
        $region37: #{tpu_custom_call.1} parent=31 // pred_check
          %p192 = pneg %p63
        $region38: #{tpu_custom_call.1} parent=31 // pred_check_branch
          %194 = sbr.rel (%p192) target = $region40
        $region39: #{tpu_custom_call.1} parent=31 // pred_region
          %195 = dma.done [#allocation7], 256
        $region40: #{tpu_custom_call.1} parent=31 // pred_fallthru
          _
        // Predicated region
        $region41: #{tpu_custom_call.1} parent=31 // pred_check
          %p196 = pneg %p84
        $region42: #{tpu_custom_call.1} parent=31 // pred_check_branch
          %198 = sbr.rel (%p196) target = $region44
        $region43: #{tpu_custom_call.1} parent=31 // pred_region
          %199 = dma.done [#allocation7], 4096
        $region44: #{tpu_custom_call.1} parent=31 // pred_fallthru
          _
        %s200 = sand.u32 %s29, 1
        %s201 = scalar_lea.sflag [#allocation4], %s200
        %s202 = sand.u32 %s29, 1
        %s203 = smul.addr %s202, 16
        %s204 = scalar_lea.vmem [#allocation3], %s203
        %p205 = pneg %p42
        %p206 = pneg %p39
        %p207 = pneg %p63
        %p208 = pneg %p60
        %p209 = pneg %p84
        %p210 = pneg %p81
        %p211 = pneg %p110
        %p212 = pneg %p107
        %s213 = sand.u32 %s97, 1
        %s214 = scalar_lea.sflag [#allocation5], %s213
        %s215 = sand.u32 %s97, 1
        %s216 = smul.addr %s215, 32
        %s217 = scalar_lea.vmem [#allocation9], %s216
        %218 = vst [vmem:[#allocation2] sm:$0xff] 0.0
        %219 = vst [vmem:[#allocation2 + $0x8] sm:$0xff] 0.0
        %220 = vst [vmem:[#allocation2 + $0x30] sm:$0xff] 0.0
        %221 = vst [vmem:[#allocation2 + $0x38] sm:$0xff] 0.0
        %v222 = vld [vmem:[%s187] sm:$0xff]
        %v223 = vld [vmem:[%s187 + $0x8] sm:$0xff]
        %224 = vst [vmem:[#allocation2 + $0x10] sm:$0xff] %v222
        %225 = vst [vmem:[#allocation2 + $0x20] sm:$0xff] %v223
        %226 = vst [vmem:[#allocation2 + $0x40] sm:$0xff] 0.0
        %227 = vst [vmem:[#allocation2 + $0x48] sm:$0xff] 0.0
        %228 = vst [vmem:[#allocation2 + $0x18] sm:$0xff] 0.0
        %229 = vst [vmem:[#allocation2 + $0x28] sm:$0xff] 0.0
        %230 = vst [vmem:[#allocation2 + $0x38] sm:$0xff] 0.0
        %v231 = vld [vmem:[#allocation2] sm:$0xff]
        %v232 = vld [vmem:[#allocation2 + $0x8] sm:$0xff]
        %v233 = vld [vmem:[#allocation2 + $0x10] sm:$0xff]
        %v234 = vld [vmem:[#allocation2 + $0x18] sm:$0xff]
        %v235 = vld [vmem:[#allocation2 + $0x20] sm:$0xff]
        %v236 = vld [vmem:[#allocation2 + $0x28] sm:$0xff]
        %v237 = vld [vmem:[#allocation2 + $0x30] sm:$0xff]
        %v238 = vld [vmem:[#allocation2 + $0x38] sm:$0xff]
        %v239 = vld [vmem:[#allocation2 + $0x40] sm:$0xff]
        %v240 = vld [vmem:[#allocation2 + $0x48] sm:$0xff]
        %v241 = vld [vmem:[#allocation6] sm:$0xff]
        %v242 = vld [vmem:[#allocation6 + $0x8] sm:$0x1]
        %243 = vrot.lane.b32.xlu0 %v231, 8
        %v244 = vpop.permute.xlu0 %243
        %245 = vrot.lane.b32.xlu0 %v233, 8
        %v246 = vpop.permute.xlu0 %245
        %247 = vrot.lane.b32.xlu0 %v235, 8
        %v248 = vpop.permute.xlu0 %247
        %249 = vrot.lane.b32.xlu0 %v237, 8
        %v250 = vpop.permute.xlu0 %249
        %251 = vrot.lane.b32.xlu0 %v239, 8
        %v252 = vpop.permute.xlu0 %251
        %253 = vrot.lane.b32.xlu0 %v232, 8
        %v254 = vpop.permute.xlu0 %253
        %255 = vrot.lane.b32.xlu0 %v234, 8
        %v256 = vpop.permute.xlu0 %255
        %257 = vrot.lane.b32.xlu0 %v236, 8
        %v258 = vpop.permute.xlu0 %257
        %259 = vrot.lane.b32.xlu0 %v238, 8
        %v260 = vpop.permute.xlu0 %259
        %261 = vrot.lane.b32.xlu0 %v240, 8
        %v262 = vpop.permute.xlu0 %261
        %v263 = vlaneseq
        %v264 = vand.u32 %v263, 127
        %vm265 = vcmp.lt.s32.totalorder %v264, 8
        %v266 = vsel %vm265, %v244, %v254
        %v267 = vsel %vm265, %v246, %v256
        %v268 = vsel %vm265, %v248, %v258
        %v269 = vsel %vm265, %v250, %v260
        %v270 = vsel %vm265, %v252, %v262
        %v271 = vsel %vm265, %v254, %v244
        %v272 = vsel %vm265, %v256, %v246
        %v273 = vsel %vm265, %v258, %v248
        %v274 = vsel %vm265, %v260, %v250
        %v275 = vsel %vm265, %v262, %v252
        %v276 = vlaneseq
        %v277 = vshrl.u32 %v276, 7
        %v278 = vsub.s32 0, %v277
        %v279 = vrot.slane %v241, %v278
        %v280 = vmul.f32 %v271, %v279
        %v281 = vmul.f32 %v272, %v279
        %v282 = vmul.f32 %v273, %v279
        %v283 = vmul.f32 %v274, %v279
        %v284 = vadd.f32 %v280, 0.0
        %v285 = vadd.f32 %v281, 0.0
        %v286 = vadd.f32 %v282, 0.0
        %v287 = vadd.f32 %v283, 0.0
        %v288 = vlaneseq
        %v289 = vshrl.u32 %v288, 7
        %v290 = vsub.s32 3, %v289
        %v291 = vrot.slane %v241, %v290
        %v292 = vmul.f32 %v272, %v291
        %v293 = vmul.f32 %v273, %v291
        %v294 = vmul.f32 %v274, %v291
        %vm298 = vcmask 1046528
        %v299 = vrot.slane %v292, 1
        %v300 = vrot.slane %v293, 1
        %v301 = vsel %vm298, %v299, %v300
        %v302 = vrot.slane %v294, 1
        %v303 = vsel %vm298, %v300, %v302
        %v308 = vadd.f32 %v284, %v299
        %v309 = vadd.f32 %v285, %v301
        %v310 = vadd.f32 %v286, %v303
        %v311 = vadd.f32 %v287, %v302
        %v312 = vlaneseq
        %v313 = vshrl.u32 %v312, 7
        %v314 = vsub.s32 6, %v313
        %v315 = vrot.slane %v241, %v314
        %v316 = vmul.f32 %v272, %v315
        %v317 = vmul.f32 %v273, %v315
        %v318 = vmul.f32 %v274, %v315
        %v319 = vmul.f32 %v275, %v315
        %vm324 = vcmask 1045504
        %v325 = vrot.slane %v316, 2
        %v326 = vrot.slane %v317, 2
        %v327 = vsel %vm324, %v325, %v326
        %v328 = vrot.slane %v318, 2
        %v329 = vsel %vm324, %v326, %v328
        %v330 = vrot.slane %v319, 2
        %v331 = vsel %vm324, %v328, %v330
        %v336 = vadd.f32 %v308, %v325
        %v337 = vadd.f32 %v309, %v327
        %v338 = vadd.f32 %v310, %v329
        %v339 = vadd.f32 %v311, %v331
        %340 = vrot.lane.b32.xlu0 %v271, 120
        %v341 = vpop.permute.xlu0 %340
        %342 = vrot.lane.b32.xlu0 %v272, 120
        %v343 = vpop.permute.xlu0 %342
        %344 = vrot.lane.b32.xlu0 %v273, 120
        %v345 = vpop.permute.xlu0 %344
        %346 = vrot.lane.b32.xlu0 %v274, 120
        %v347 = vpop.permute.xlu0 %346
        %348 = vrot.lane.b32.xlu0 %v275, 120
        %v349 = vpop.permute.xlu0 %348
        %350 = vrot.lane.b32.xlu0 %v266, 120
        %v351 = vpop.permute.xlu0 %350
        %352 = vrot.lane.b32.xlu0 %v267, 120
        %v353 = vpop.permute.xlu0 %352
        %354 = vrot.lane.b32.xlu0 %v268, 120
        %v355 = vpop.permute.xlu0 %354
        %356 = vrot.lane.b32.xlu0 %v269, 120
        %v357 = vpop.permute.xlu0 %356
        %358 = vrot.lane.b32.xlu0 %v270, 120
        %v359 = vpop.permute.xlu0 %358
        %vm360 = vcmp.lt.s32.totalorder %v264, 120
        %v361 = vsel %vm360, %v341, %v351
        %v362 = vsel %vm360, %v343, %v353
        %v363 = vsel %vm360, %v345, %v355
        %v364 = vsel %vm360, %v347, %v357
        %v365 = vsel %vm360, %v349, %v359
        %v366 = vsel %vm360, %v351, %v341
        %v367 = vsel %vm360, %v353, %v343
        %v368 = vsel %vm360, %v355, %v345
        %v369 = vsel %vm360, %v357, %v347
        %v370 = vsel %vm360, %v359, %v349
        %v371 = vlaneseq
        %v372 = vshrl.u32 %v371, 7
        %v373 = vsub.s32 1, %v372
        %v374 = vrot.slane %v241, %v373
        %v375 = vmul.f32 %v361, %v374
        %v376 = vmul.f32 %v362, %v374
        %v377 = vmul.f32 %v363, %v374
        %v378 = vmul.f32 %v364, %v374
        %v379 = vadd.f32 %v336, %v375
        %v380 = vadd.f32 %v337, %v376
        %v381 = vadd.f32 %v338, %v377
        %v382 = vadd.f32 %v339, %v378
        %v383 = vlaneseq
        %v384 = vshrl.u32 %v383, 7
        %v385 = vsub.s32 4, %v384
        %v386 = vrot.slane %v241, %v385
        %v387 = vmul.f32 %v362, %v386
        %v388 = vmul.f32 %v363, %v386
        %v389 = vmul.f32 %v364, %v386
        %v393 = vrot.slane %v387, 1
        %v394 = vrot.slane %v388, 1
        %v395 = vsel %vm298, %v393, %v394
        %v396 = vrot.slane %v389, 1
        %v397 = vsel %vm298, %v394, %v396
        %v402 = vadd.f32 %v379, %v393
        %v403 = vadd.f32 %v380, %v395
        %v404 = vadd.f32 %v381, %v397
        %v405 = vadd.f32 %v382, %v396
        %v406 = vlaneseq
        %v407 = vshrl.u32 %v406, 7
        %v408 = vsub.s32 7, %v407
        %v409 = vrot.slane %v241, %v408
        %v410 = vmul.f32 %v362, %v409
        %v411 = vmul.f32 %v363, %v409
        %v412 = vmul.f32 %v364, %v409
        %v413 = vmul.f32 %v365, %v409
        %v418 = vrot.slane %v410, 2
        %v419 = vrot.slane %v411, 2
        %v420 = vsel %vm324, %v418, %v419
        %v421 = vrot.slane %v412, 2
        %v422 = vsel %vm324, %v419, %v421
        %v423 = vrot.slane %v413, 2
        %v424 = vsel %vm324, %v421, %v423
        %v429 = vadd.f32 %v402, %v418
        %v430 = vadd.f32 %v403, %v420
        %v431 = vadd.f32 %v404, %v422
        %v432 = vadd.f32 %v405, %v424
        %433 = vrot.lane.b32.xlu0 %v361, 120
        %v434 = vpop.permute.xlu0 %433
        %435 = vrot.lane.b32.xlu0 %v362, 120
        %v436 = vpop.permute.xlu0 %435
        %437 = vrot.lane.b32.xlu0 %v363, 120
        %v438 = vpop.permute.xlu0 %437
        %439 = vrot.lane.b32.xlu0 %v364, 120
        %v440 = vpop.permute.xlu0 %439
        %441 = vrot.lane.b32.xlu0 %v365, 120
        %v442 = vpop.permute.xlu0 %441
        %443 = vrot.lane.b32.xlu0 %v366, 120
        %v444 = vpop.permute.xlu0 %443
        %445 = vrot.lane.b32.xlu0 %v367, 120
        %v446 = vpop.permute.xlu0 %445
        %447 = vrot.lane.b32.xlu0 %v368, 120
        %v448 = vpop.permute.xlu0 %447
        %449 = vrot.lane.b32.xlu0 %v369, 120
        %v450 = vpop.permute.xlu0 %449
        %451 = vrot.lane.b32.xlu0 %v370, 120
        %v452 = vpop.permute.xlu0 %451
        %v453 = vsel %vm360, %v434, %v444
        %v454 = vsel %vm360, %v436, %v446
        %v455 = vsel %vm360, %v438, %v448
        %v456 = vsel %vm360, %v440, %v450
        %v457 = vsel %vm360, %v442, %v452
        %v458 = vlaneseq
        %v459 = vshrl.u32 %v458, 7
        %v460 = vsub.s32 2, %v459
        %v461 = vrot.slane %v241, %v460
        %v462 = vmul.f32 %v453, %v461
        %v463 = vmul.f32 %v454, %v461
        %v464 = vmul.f32 %v455, %v461
        %v465 = vmul.f32 %v456, %v461
        %v466 = vadd.f32 %v429, %v462
        %v467 = vadd.f32 %v430, %v463
        %v468 = vadd.f32 %v431, %v464
        %v469 = vadd.f32 %v432, %v465
        %v470 = vlaneseq
        %v471 = vshrl.u32 %v470, 7
        %v472 = vsub.s32 5, %v471
        %v473 = vrot.slane %v241, %v472
        %v474 = vmul.f32 %v454, %v473
        %v475 = vmul.f32 %v455, %v473
        %v476 = vmul.f32 %v456, %v473
        %v480 = vrot.slane %v474, 1
        %v481 = vrot.slane %v475, 1
        %v482 = vsel %vm298, %v480, %v481
        %v483 = vrot.slane %v476, 1
        %v484 = vsel %vm298, %v481, %v483
        %v489 = vadd.f32 %v466, %v480
        %v490 = vadd.f32 %v467, %v482
        %v491 = vadd.f32 %v468, %v484
        %v492 = vadd.f32 %v469, %v483
        %v493 = vlaneseq
        %v494 = vshrl.u32 %v493, 7
        %v495 = vsub.s32 0, %v494
        %v496 = vrot.slane %v242, %v495
        %v497 = vmul.f32 %v454, %v496
        %v498 = vmul.f32 %v455, %v496
        %v499 = vmul.f32 %v456, %v496
        %v500 = vmul.f32 %v457, %v496
        %v505 = vrot.slane %v497, 2
        %v506 = vrot.slane %v498, 2
        %v507 = vsel %vm324, %v505, %v506
        %v508 = vrot.slane %v499, 2
        %v509 = vsel %vm324, %v506, %v508
        %v510 = vrot.slane %v500, 2
        %v511 = vsel %vm324, %v508, %v510
        %v516 = vadd.f32 %v489, %v505
        %v517 = vadd.f32 %v490, %v507
        %v518 = vadd.f32 %v491, %v509
        %v519 = vadd.f32 %v492, %v511
        %v520 = vld [vmem:[#allocation8] sm:$0xff]
        %v521 = vld [vmem:[#allocation8 + $0x8] sm:$0xff]
        %v522 = vld [vmem:[#allocation8 + $0x10] sm:$0xff]
        %v523 = vld [vmem:[#allocation8 + $0x18] sm:$0xff]
        %v524 = vld [vmem:[#allocation8 + $0x20] sm:$0xff]
        %v525 = vld [vmem:[#allocation8 + $0x28] sm:$0xff]
        %v526 = vld [vmem:[#allocation8 + $0x30] sm:$0xff]
        %v527 = vld [vmem:[#allocation8 + $0x38] sm:$0xff]
        %v528 = vld [vmem:[#allocation8 + $0x40] sm:$0xff]
        %v529 = vld [vmem:[#allocation8 + $0x48] sm:$0xff]
        %v530 = vld [vmem:[#allocation8 + $0x50] sm:$0xff]
        %v531 = vld [vmem:[#allocation8 + $0x58] sm:$0xff]
        %v532 = vld [vmem:[#allocation8 + $0x60] sm:$0xff]
        %v533 = vld [vmem:[#allocation8 + $0x68] sm:$0xff]
        %v534 = vld [vmem:[#allocation8 + $0x70] sm:$0xff]
        %v535 = vld [vmem:[#allocation8 + $0x78] sm:$0xff]
        %v536 = vld [vmem:[#allocation8 + $0x80] sm:$0xff]
        %v537 = vld [vmem:[#allocation8 + $0x88] sm:$0xff]
        %v538 = vld [vmem:[#allocation8 + $0x90] sm:$0xff]
        %v539 = vld [vmem:[#allocation8 + $0x98] sm:$0xff]
        %v540 = vld [vmem:[#allocation8 + $0xa0] sm:$0xff]
        %v541 = vld [vmem:[#allocation8 + $0xa8] sm:$0xff]
        %v542 = vld [vmem:[#allocation8 + $0xb0] sm:$0xff]
        %v543 = vld [vmem:[#allocation8 + $0xb8] sm:$0xff]
        %v544 = vld [vmem:[#allocation8 + $0xc0] sm:$0xff]
        %v545 = vld [vmem:[#allocation8 + $0xc8] sm:$0xff]
        %v546 = vld [vmem:[#allocation8 + $0xd0] sm:$0xff]
        %v547 = vld [vmem:[#allocation8 + $0xd8] sm:$0xff]
        %v548 = vld [vmem:[#allocation8 + $0xe0] sm:$0xff]
        %v549 = vld [vmem:[#allocation8 + $0xe8] sm:$0xff]
        %v550 = vld [vmem:[#allocation8 + $0xf0] sm:$0xff]
        %v551 = vld [vmem:[#allocation8 + $0xf8] sm:$0xff]
        %vm556 = vcmask 1040384
        %v557 = vrot.slane %v516, 7
        %v558 = vrot.slane %v517, 7
        %v559 = vsel %vm556, %v557, %v558
        %v560 = vrot.slane %v518, 7
        %v561 = vsel %vm556, %v558, %v560
        %v562 = vrot.slane %v519, 7
        %v563 = vsel %vm556, %v560, %v562
        %567 = vmatprep.subr.mxu0 %v551
        %568 = vmatpush1.msra.mxu0 %v550
        %569 = vmatprep.subr.mxu0 %v549
        %570 = vmatpush1.msra.mxu0 %v548
        %571 = vmatprep.subr.mxu0 %v547
        %572 = vmatpush1.msra.mxu0 %v546
        %573 = vmatprep.subr.mxu0 %v545
        %574 = vmatpush1.msra.mxu0 %v544
        %575 = vmatprep.subr.mxu0 %v543
        %576 = vmatpush1.msra.mxu0 %v542
        %577 = vmatprep.subr.mxu0 %v541
        %578 = vmatpush1.msra.mxu0 %v540
        %579 = vmatprep.subr.mxu0 %v539
        %580 = vmatpush1.msra.mxu0 %v538
        %581 = vmatprep.subr.mxu0 %v537
        %582 = vmatpush1.msra.mxu0 %v536
        %583 = vmatprep.subr.mxu0 %v535
        %584 = vmatpush1.msra.mxu0 %v534
        %585 = vmatprep.subr.mxu0 %v533
        %586 = vmatpush1.msra.mxu0 %v532
        %587 = vmatprep.subr.mxu0 %v531
        %588 = vmatpush1.msra.mxu0 %v530
        %589 = vmatprep.subr.mxu0 %v529
        %590 = vmatpush1.msra.mxu0 %v528
        %591 = vmatprep.subr.mxu0 %v527
        %592 = vmatpush1.msra.mxu0 %v526
        %593 = vmatprep.subr.mxu0 %v525
        %594 = vmatpush1.msra.mxu0 %v524
        %595 = vmatprep.subr.mxu0 %v523
        %596 = vmatpush1.msra.mxu0 %v522
        %597 = vmatprep.subr.mxu0 %v521
        %598 = vmatpush1.msra.mxu0 %v520
        %599 = vmatprep.subr.mxu0 0.0
        %600 = vmatpush2.msra.mxu0 0.0
        %601 = vmatprep.subr.mxu0 0.0
        %602 = vmatpush2.msra.mxu0 0.0
        %603 = vmatprep.subr.mxu0 0.0
        %604 = vmatpush2.msra.mxu0 0.0
        %605 = vmatprep.subr.mxu0 0.0
        %606 = vmatpush2.msra.mxu0 0.0
        %607 = vmatprep.subr.mxu0 0.0
        %608 = vmatpush2.msra.mxu0 0.0
        %609 = vmatprep.subr.mxu0 0.0
        %610 = vmatpush2.msra.mxu0 0.0
        %611 = vmatprep.subr.mxu0 0.0
        %612 = vmatpush2.msra.mxu0 0.0
        %613 = vmatprep.subr.mxu0 0.0
        %614 = vmatpush2.msra.mxu0 0.0
        %615 = vmatprep.subr.mxu0 0.0
        %616 = vmatpush2.msra.mxu0 0.0
        %617 = vmatprep.subr.mxu0 0.0
        %618 = vmatpush2.msra.mxu0 0.0
        %619 = vmatprep.subr.mxu0 0.0
        %620 = vmatpush2.msra.mxu0 0.0
        %621 = vmatprep.subr.mxu0 0.0
        %622 = vmatpush2.msra.mxu0 0.0
        %623 = vmatprep.subr.mxu0 0.0
        %624 = vmatpush2.msra.mxu0 0.0
        %625 = vmatprep.subr.mxu0 0.0
        %626 = vmatpush2.msra.mxu0 0.0
        %627 = vmatprep.subr.mxu0 0.0
        %628 = vmatpush2.msra.mxu0 0.0
        %629 = vmatprep.subr.mxu0 0.0
        %630 = vmatpush2.msra.mxu0 0.0
        %631 = vmatprep.mubr.f32.mxu0 0.0
        %632 = vmatmul.mubr.f32.gmra.mxu0 %v559
        %v633 = vpop.f32.mrf.mxu0
        %v634 = vadd.f32 0.0, %v633
        %v635 = vpop.f32.mrf.mxu0
        %v636 = vadd.f32 0.0, %v635
        %637 = vmatprep.mubr.f32.mxu0 0.0
        %638 = vmatmul.mubr.f32.gmra.mxu0 %v561
        %v639 = vpop.f32.mrf.mxu0
        %v640 = vadd.f32 0.0, %v639
        %v641 = vpop.f32.mrf.mxu0
        %v642 = vadd.f32 0.0, %v641
        %643 = vmatprep.mubr.f32.mxu0 0.0
        %644 = vmatmul.mubr.f32.gmra.mxu0 %v563
        %v645 = vpop.f32.mrf.mxu0
        %v646 = vpop.f32.mrf.mxu0
        %647 = vdwg.mxu0
        %648 = vst [vmem:[%s217] sm:$0xff] %v634
        %649 = vst [vmem:[%s217 + $0x8] sm:$0xff] %v636
        %650 = vst [vmem:[%s217 + $0x10] sm:$0xff] %v640
        %651 = vst [vmem:[%s217 + $0x18] sm:$0xff] %v642
        %s652 = sand.u32 %s97, 1
        %s653 = scalar_lea.sflag [#allocation5], %s652
        %s654 = sand.u32 %s97, 1
        %s655 = smul.addr %s654, 32
        %s656 = scalar_lea.vmem [#allocation9], %s655
        // Predicated region
        $region45: #{tpu_custom_call.1} parent=31 // pred_check
          %p657 = pneg %p107
        $region46: #{tpu_custom_call.1} parent=31 // pred_check_branch
          %659 = sbr.rel (%p657) target = $region48
        $region47: #{tpu_custom_call.1} parent=31 // pred_region
          %s661 = ssub.s32 512, 512
          %662 = vsyncadd %s653, %s661
          %s663 = smul.addr %s21, 4
          %s664 = smul.addr %s663, 128
          %s665 = scalar_lea.hbm %s3, %s664
          %s666 = sshll.u32 %s656, 4
          %s667 = int_to_ptr.vmem [resolvable:$true] %s666
          %672 = dma.vmem_to_hbm [thread:$0]  %s667, 512, %s665, %s653, 256, 256, 16
        $region48: #{tpu_custom_call.1} parent=31 // pred_fallthru
          _
      $region32: #{tpu_custom_call.1} parent=5 // pred_fallthru
        _
      %p673 = scmp.le.s32.totalorder 2, %s16
      // Predicated region
      $region49: #{tpu_custom_call.1} parent=5 // pred_check
        %p674 = pneg %p673
      $region50: #{tpu_custom_call.1} parent=5 // pred_check_branch
        %676 = sbr.rel (%p674) target = $region52
      $region51: #{tpu_custom_call.1} parent=5 // pred_region
        %s677 = ssub.s32 %s16, 2
        // Predicated region
        $region53: #{tpu_custom_call.1} parent=51 // pred_check
          %p678 = pneg %p113
        $region54: #{tpu_custom_call.1} parent=51 // pred_check_branch
          %680 = sbr.rel (%p678) target = $region56
        $region55: #{tpu_custom_call.1} parent=51 // pred_region
          %s681 = sand.u32 %s98, 1
          %s682 = scalar_lea.sflag [#allocation5], %s681
          %s683 = sand.u32 %s98, 1
          %s684 = smul.addr %s683, 32
          %s685 = scalar_lea.vmem [#allocation9], %s684
          %686 = dma.done %s682, 512
        $region56: #{tpu_custom_call.1} parent=51 // pred_fallthru
          _
      $region52: #{tpu_custom_call.1} parent=5 // pred_fallthru
        _
    $region6: #{tpu_custom_call.1} parent=1 // loop_footer
      %s20 = sadd.s32 1, %s16
    $region7: #{tpu_custom_call.1} parent=1 // loop_footer_branch
      %15 = sbr.rel target = $region3
    $region8: #{tpu_custom_call.1} parent=1 // loop_exit
      _
    %687 = vsyncpa [#allocation4], 1
    %s688 = scalar_lea.sflag [#allocation4], 1
    %689 = vsyncpa %s688, 1
    %690 = vsyncpa [#allocation7], 1
    %691 = vsyncpa [#allocation5], 1
    %s692 = scalar_lea.sflag [#allocation5], 1
    %693 = vsyncpa %s692, 1

</llo_original>
